<compile_context>
chip_gen: v6e
topology: v6e:2x2x1
jax: 0.10.0
libtpu: 0.0.40
codegen_flags: <defaults>
</compile_context>

<pallas_src>
import jax
import jax.numpy as jnp
from jax.experimental import pallas as pl
from jax.experimental.pallas import tpu as pltpu

N_OBS = 3      # Pendulum observation dim
N_ACT = 1      # Pendulum action dim
H1 = 400
H2 = 300

# Lane-padded sizes (multiples of 128 where it matters).
IN_P = 8       # merged [obs(3), act(1), zeros(4)] input width
H1P = 512
H2P = 384
OUT_P = 128    # lane-dense output width (wrapper slices to 1)


def _round_up(n, m):
    return ((n + m - 1) // m) * m


def ddpg_critic_kernel(xa_ref, w1_ref, b1_ref,
                       w2o_ref, w2a_ref, b2_ref,
                       w3_ref, b3_ref, out_ref):
    xa = xa_ref[...]                                     # (TB, IN_P) f32

    # --- Layer 1: Linear(3, 400) + ReLU on the MXU (f32, K=8 zero-padded) ---
    obs = jnp.maximum(
        jnp.dot(xa, w1_ref[...], preferred_element_type=jnp.float32)
        + b1_ref[...],
        0.0)                                             # (TB, H1P) f32

    # --- Layer 2: Linear(400 + 1, 300) + ReLU ---
    # concat folded: obs @ W2_obs (bf16 MXU, f32 acc) + a * w2_act (VPU, K=1) + b2
    act = xa[:, N_OBS:N_OBS + 1]                         # (TB, 1) f32
    h = jnp.dot(obs.astype(jnp.bfloat16), w2o_ref[...],
                preferred_element_type=jnp.float32)      # (TB, H2P) f32
    h = jnp.maximum(h + act * w2a_ref[...] + b2_ref[...], 0.0)

    # --- Layer 3: Linear(300, 1) as multiply + lane reduce (no N=1 matmul) ---
    q = jnp.sum(h * w3_ref[...], axis=-1, keepdims=True)         # (TB, 1)
    out_ref[...] = q + b3_ref[...]                       # lane-dense (TB, OUT_P)


def pad_params(params):
    """Zero-pad PyTorch-shaped params into lane/sublane-friendly slabs."""
    w1, b1, w2o, w2a, b2, w3, b3 = params
    w1p = jnp.zeros((IN_P, H1P), jnp.float32).at[:N_OBS, :H1].set(w1)
    b1p = jnp.zeros((1, H1P), jnp.float32).at[:, :H1].set(b1)
    # Layer-2 obs weights stored as bf16 (MXU operand); everything else f32.
    w2op = (jnp.zeros((H1P, H2P), jnp.float32).at[:H1, :H2].set(w2o)
            ).astype(jnp.bfloat16)
    w2ap = jnp.zeros((1, H2P), jnp.float32).at[:, :H2].set(w2a)
    b2p = jnp.zeros((1, H2P), jnp.float32).at[:, :H2].set(b2)
    w3p = jnp.zeros((1, H2P), jnp.float32).at[:, :H2].set(w3.reshape(1, H2))
    b3p = jnp.zeros((1, OUT_P), jnp.float32) + b3.reshape(1, 1)
    return (w1p, b1p, w2op, w2ap, b2p, w3p, b3p)


def _choose_tile(B, tb):
    """Pick a batch tile: as fat as allowed, but >=2 grid steps when B permits
    (so the parallel axis shards across v7x's two TensorCores)."""
    tb = min(tb, _round_up(B, 8))
    if B > 8 and _round_up(B, tb) // tb < 2:
        tb = _round_up((B + 1) // 2, 8)
    return tb


def ddpg_critic_forward(x, a, padded_params, *, tb=1024):
    """x: (B, N_OBS), a: (B, N_ACT) -> (B, 1)."""
    B = x.shape[0]
    w1p, b1p, w2op, w2ap, b2p, w3p, b3p = padded_params

    tb = _choose_tile(B, tb)
    Bp = _round_up(B, tb)

    # Merge obs + action into one lane-padded (Bp, IN_P) block (single DMA).
    xa = jnp.zeros((Bp, IN_P), jnp.float32)
    xa = xa.at[:B, :N_OBS].set(x).at[:B, N_OBS:N_OBS + N_ACT].set(a)

    grid = (Bp // tb,)

    def resident(shape):
        # Weights/biases: same block every grid step -> VMEM-resident,
        # single-buffered (no second copy allocated).
        return pl.BlockSpec(shape, lambda i: (0, 0),
                            pipeline_mode=pl.Buffered(1))

    flops = int(2 * Bp * (IN_P * H1P + H1P * H2P + N_ACT * H2P + H2P))
    bytes_accessed = int(4 * (Bp * IN_P + Bp * OUT_P
                              + IN_P * H1P + H1P
                              + 3 * H2P + OUT_P)
                         + 2 * H1P * H2P)

    out = pl.pallas_call(
        ddpg_critic_kernel,
        out_shape=jax.ShapeDtypeStruct((Bp, OUT_P), jnp.float32),
        grid=grid,
        in_specs=[
            pl.BlockSpec((tb, IN_P), lambda i: (i, 0)),   # xa (batch-tiled)
            resident((IN_P, H1P)),                        # w1 (padded rows)
            resident((1, H1P)),                           # b1
            resident((H1P, H2P)),                         # w2 (obs part, bf16)
            resident((1, H2P)),                           # w2 (action part)
            resident((1, H2P)),                           # b2
            resident((1, H2P)),                           # w3 as a row
            resident((1, OUT_P)),                         # b3 (lane-dense)
        ],
        out_specs=pl.BlockSpec((tb, OUT_P), lambda i: (i, 0)),
        compiler_params=pltpu.CompilerParams(
            dimension_semantics=("parallel",),
            vmem_limit_bytes=32 * 1024 * 1024),
        cost_estimate=pl.CostEstimate(
            flops=flops, transcendentals=0, bytes_accessed=bytes_accessed),
    )(xa, w1p, b1p, w2op, w2ap, b2p, w3p, b3p)

    return out[:B, :1]


def init_params(key):
    """Deterministic init mimicking PyTorch nn.Linear default (U[-1/sqrt(fan_in), ...])."""
    def linear(key, fan_in, fan_out):
        kw, kb = jax.random.split(key)
        bound = 1.0 / jnp.sqrt(fan_in)
        w = jax.random.uniform(kw, (fan_in, fan_out), jnp.float32, -bound, bound)
        b = jax.random.uniform(kb, (1, fan_out), jnp.float32, -bound, bound)
        return w, b

    k1, k2, k3 = jax.random.split(key, 3)
    w1, b1 = linear(k1, N_OBS, H1)                       # obs_net Linear(3, 400)
    w2, b2 = linear(k2, H1 + N_ACT, H2)                  # out_net Linear(401, 300)
    w2o, w2a = w2[:H1, :], w2[H1:, :]                    # split concat input
    w3, b3 = linear(k3, H2, 1)                           # out_net Linear(300, 1)
    return (w1, b1, w2o, w2a, b2, w3, b3)


def reference_forward(x, a, params):
    """Pure-JAX f32 reference (matches the PyTorch module)."""
    w1, b1, w2o, w2a, b2, w3, b3 = params
    obs = jnp.maximum(x @ w1 + b1, 0.0)
    h = jnp.maximum(obs @ w2o + a @ w2a + b2, 0.0)
    return h @ w3 + b3


if __name__ == "__main__":
    key = jax.random.PRNGKey(0)
    kp, kx, ka = jax.random.split(key, 3)

    params = init_params(kp)
    padded = pad_params(params)

    B = 8
    x = jax.random.normal(kx, (B, N_OBS), jnp.float32)   # observations
    a = jax.random.normal(ka, (B, N_ACT), jnp.float32)   # actions

    out = ddpg_critic_forward(x, a, padded)
    out = jax.block_until_ready(out)

    ref = reference_forward(x, a, params)
    assert out.shape == (B, 1)
    # Layer-2 matmul runs in bf16 (f32 accumulation) -> ~1e-3 abs deviation.
    assert jnp.allclose(out, ref, atol=2e-2, rtol=2e-2)

    print("KERNEL_OK")
</pallas_src>

<mosaic_0001>
module attributes {stable_mosaic.version = 11 : i64} {
  func.func @ddpg_critic_kernel(%arg0: i32, %arg1: memref<8x8xf32, #tpu.memory_space<vmem>>, %arg2: memref<8x512xf32, #tpu.memory_space<vmem>>, %arg3: memref<1x512xf32, #tpu.memory_space<vmem>>, %arg4: memref<512x384xbf16, #tpu.memory_space<vmem>>, %arg5: memref<1x384xf32, #tpu.memory_space<vmem>>, %arg6: memref<1x384xf32, #tpu.memory_space<vmem>>, %arg7: memref<1x384xf32, #tpu.memory_space<vmem>>, %arg8: memref<1x128xf32, #tpu.memory_space<vmem>>, %arg9: memref<8x128xf32, #tpu.memory_space<vmem>>) attributes {dimension_semantics = [#tpu.dimension_semantics<parallel>], iteration_bounds = array<i64: 1>, scalar_prefetch = 0 : i64, scratch_operands = 0 : i64, tpu.core_type = #tpu.core_type<tc>, window_params = [{transform_indices = @transform_0, window_bounds = array<i64: 8, 8>}, {pipeline_mode = #tpu.pipeline_mode<synchronous>, transform_indices = @transform_1, window_bounds = array<i64: 8, 512>}, {pipeline_mode = #tpu.pipeline_mode<synchronous>, transform_indices = @transform_2, window_bounds = array<i64: 1, 512>}, {pipeline_mode = #tpu.pipeline_mode<synchronous>, transform_indices = @transform_3, window_bounds = array<i64: 512, 384>}, {pipeline_mode = #tpu.pipeline_mode<synchronous>, transform_indices = @transform_4, window_bounds = array<i64: 1, 384>}, {pipeline_mode = #tpu.pipeline_mode<synchronous>, transform_indices = @transform_5, window_bounds = array<i64: 1, 384>}, {pipeline_mode = #tpu.pipeline_mode<synchronous>, transform_indices = @transform_6, window_bounds = array<i64: 1, 384>}, {pipeline_mode = #tpu.pipeline_mode<synchronous>, transform_indices = @transform_7, window_bounds = array<i64: 1, 128>}, {transform_indices = @transform_8, window_bounds = array<i64: 8, 128>}]} {
    %c0 = arith.constant 0 : index
    %c0_0 = arith.constant 0 : index
    %0 = vector.load %arg1[%c0, %c0_0] : memref<8x8xf32, #tpu.memory_space<vmem>>, vector<8x8xf32>
    %c0_1 = arith.constant 0 : index
    %c0_2 = arith.constant 0 : index
    %1 = vector.load %arg2[%c0_1, %c0_2] : memref<8x512xf32, #tpu.memory_space<vmem>>, vector<8x512xf32>
    %cst = arith.constant dense<0.000000e+00> : vector<8x512xf32>
    %2 = tpu.matmul %0, %1, %cst {dimension_numbers = #tpu.dot_dimension_numbers<[1], [0], [0], [1], [0, 0, 1, 1], [], []>} : vector<8x8xf32>, vector<8x512xf32>, vector<8x512xf32> -> vector<8x512xf32>
    %c0_3 = arith.constant 0 : index
    %c0_4 = arith.constant 0 : index
    %3 = vector.load %arg3[%c0_3, %c0_4] : memref<1x512xf32, #tpu.memory_space<vmem>>, vector<1x512xf32>
    %4 = vector.broadcast %3 : vector<1x512xf32> to vector<8x512xf32>
    %5 = arith.addf %2, %4 : vector<8x512xf32>
    %cst_5 = arith.constant 0.000000e+00 : f32
    %6 = vector.broadcast %cst_5 : f32 to vector<8x512xf32>
    %7 = arith.maximumf %5, %6 : vector<8x512xf32>
    %8 = vector.extract_strided_slice %0 {offsets = [0, 3], sizes = [8, 1], strides = [1, 1]} : vector<8x8xf32> to vector<8x1xf32>
    %9 = arith.truncf %7 : vector<8x512xf32> to vector<8x512xbf16>
    %c0_6 = arith.constant 0 : index
    %c0_7 = arith.constant 0 : index
    %10 = vector.load %arg4[%c0_6, %c0_7] : memref<512x384xbf16, #tpu.memory_space<vmem>>, vector<512x384xbf16>
    %cst_8 = arith.constant dense<0.000000e+00> : vector<8x384xf32>
    %11 = tpu.matmul %9, %10, %cst_8 {dimension_numbers = #tpu.dot_dimension_numbers<[1], [0], [0], [1], [0, 0, 1, 1], [], []>} : vector<8x512xbf16>, vector<512x384xbf16>, vector<8x384xf32> -> vector<8x384xf32>
    %c0_9 = arith.constant 0 : index
    %c0_10 = arith.constant 0 : index
    %12 = vector.load %arg5[%c0_9, %c0_10] : memref<1x384xf32, #tpu.memory_space<vmem>>, vector<1x384xf32>
    %13 = vector.broadcast %8 : vector<8x1xf32> to vector<8x384xf32>
    %14 = vector.broadcast %12 : vector<1x384xf32> to vector<8x384xf32>
    %15 = arith.mulf %13, %14 : vector<8x384xf32>
    %16 = arith.addf %11, %15 : vector<8x384xf32>
    %c0_11 = arith.constant 0 : index
    %c0_12 = arith.constant 0 : index
    %17 = vector.load %arg6[%c0_11, %c0_12] : memref<1x384xf32, #tpu.memory_space<vmem>>, vector<1x384xf32>
    %18 = vector.broadcast %17 : vector<1x384xf32> to vector<8x384xf32>
    %19 = arith.addf %16, %18 : vector<8x384xf32>
    %cst_13 = arith.constant 0.000000e+00 : f32
    %20 = vector.broadcast %cst_13 : f32 to vector<8x384xf32>
    %21 = arith.maximumf %19, %20 : vector<8x384xf32>
    %c0_14 = arith.constant 0 : index
    %c0_15 = arith.constant 0 : index
    %22 = vector.load %arg7[%c0_14, %c0_15] : memref<1x384xf32, #tpu.memory_space<vmem>>, vector<1x384xf32>
    %23 = vector.broadcast %22 : vector<1x384xf32> to vector<8x384xf32>
    %24 = arith.mulf %21, %23 : vector<8x384xf32>
    %cst_16 = arith.constant dense<0.000000e+00> : vector<8xf32>
    %25 = vector.multi_reduction <add>, %24, %cst_16 [1] : vector<8x384xf32> to vector<8xf32>
    %26 = vector.shape_cast %25 : vector<8xf32> to vector<8x1xf32>
    %c0_17 = arith.constant 0 : index
    %c0_18 = arith.constant 0 : index
    %27 = vector.load %arg8[%c0_17, %c0_18] : memref<1x128xf32, #tpu.memory_space<vmem>>, vector<1x128xf32>
    %28 = vector.broadcast %26 : vector<8x1xf32> to vector<8x128xf32>
    %29 = vector.broadcast %27 : vector<1x128xf32> to vector<8x128xf32>
    %30 = arith.addf %28, %29 : vector<8x128xf32>
    %c0_19 = arith.constant 0 : index
    %c0_20 = arith.constant 0 : index
    %31 = vector.load %arg9[%c0_19, %c0_20] : memref<8x128xf32, #tpu.memory_space<vmem>>, vector<8x128xf32>
    tpu.vector_store %arg9[%c0_19, %c0_20], %30 {strides = array<i32>} : memref<8x128xf32, #tpu.memory_space<vmem>>, vector<8x128xf32>,
    return
  }
  func.func @transform_0(%arg0: i32) -> (i32, i32) {
    %c0_i32 = arith.constant 0 : i32
    %c0_i32_0 = arith.constant 0 : i32
    return %arg0, %c0_i32 : i32, i32
  }
  func.func @transform_1(%arg0: i32) -> (i32, i32) {
    %c0_i32 = arith.constant 0 : i32
    %c0_i32_0 = arith.constant 0 : i32
    %c0_i32_1 = arith.constant 0 : i32
    return %c0_i32, %c0_i32_0 : i32, i32
  }
  func.func @transform_2(%arg0: i32) -> (i32, i32) {
    %c0_i32 = arith.constant 0 : i32
    %c0_i32_0 = arith.constant 0 : i32
    %c0_i32_1 = arith.constant 0 : i32
    return %c0_i32, %c0_i32_0 : i32, i32
  }
  func.func @transform_3(%arg0: i32) -> (i32, i32) {
    %c0_i32 = arith.constant 0 : i32
    %c0_i32_0 = arith.constant 0 : i32
    %c0_i32_1 = arith.constant 0 : i32
    return %c0_i32, %c0_i32_0 : i32, i32
  }
  func.func @transform_4(%arg0: i32) -> (i32, i32) {
    %c0_i32 = arith.constant 0 : i32
    %c0_i32_0 = arith.constant 0 : i32
    %c0_i32_1 = arith.constant 0 : i32
    return %c0_i32, %c0_i32_0 : i32, i32
  }
  func.func @transform_5(%arg0: i32) -> (i32, i32) {
    %c0_i32 = arith.constant 0 : i32
    %c0_i32_0 = arith.constant 0 : i32
    %c0_i32_1 = arith.constant 0 : i32
    return %c0_i32, %c0_i32_0 : i32, i32
  }
  func.func @transform_6(%arg0: i32) -> (i32, i32) {
    %c0_i32 = arith.constant 0 : i32
    %c0_i32_0 = arith.constant 0 : i32
    %c0_i32_1 = arith.constant 0 : i32
    return %c0_i32, %c0_i32_0 : i32, i32
  }
  func.func @transform_7(%arg0: i32) -> (i32, i32) {
    %c0_i32 = arith.constant 0 : i32
    %c0_i32_0 = arith.constant 0 : i32
    %c0_i32_1 = arith.constant 0 : i32
    return %c0_i32, %c0_i32_0 : i32, i32
  }
  func.func @transform_8(%arg0: i32) -> (i32, i32) {
    %c0_i32 = arith.constant 0 : i32
    %c0_i32_0 = arith.constant 0 : i32
    return %arg0, %c0_i32 : i32, i32
  }
}

</mosaic_0001>

<llo_original>
// kernel: tpu_custom_call.1
$region0: #{tpu_custom_call.1}
  #allocation0 [shape = 'u32[]', space=smem, size = 0x4, offset = 0x4, fixed_abs, tag = 'smem constant byte address 0x4 - core index']
  #allocation1 [shape = 'u32[144,128]{1,0:T(1,128)}', space=vmem, size = 0x12000, scoped, tag = 'internal scratch']
  %s0 = inlined_call_operand.hbm [shape: f32[8,8], index: 0, kind: input, shape index: {}]
  %s1 = inlined_call_operand.hbm [shape: f32[8,512], index: 1, kind: input, shape index: {}]
  %s2 = inlined_call_operand.hbm [shape: f32[1,512], index: 2, kind: input, shape index: {}]
  %s3 = inlined_call_operand.hbm [shape: bf16[512,384], index: 3, kind: input, shape index: {}]
  %s4 = inlined_call_operand.vmem [shape: f32[1,384], index: 4, kind: input, shape index: {}]
  %s5 = inlined_call_operand.vmem [shape: f32[1,384], index: 5, kind: input, shape index: {}]
  %s6 = inlined_call_operand.vmem [shape: f32[1,384], index: 6, kind: input, shape index: {}]
  %s7 = inlined_call_operand.vmem [shape: f32[1,128], index: 7, kind: input, shape index: {}]
  %s8 = inlined_call_operand.hbm [shape: f32[8,128], index: 8, kind: output, shape index: {}]
  %s9 = sld [smem:[#allocation0]]
  $region58: #{tpu_custom_call.1} parent=0
    _
  %s11 = ssub.s32 1, %s9
  %s12 = scalar_select 0, %s11, %s9
  $region1: #{tpu_custom_call.1} parent=0
    #allocation2 [shape = 'u8[4096]{0}', space=vmem, size = 0x1000, scoped, tag = 'input window, operand 0, single buffered']
    #allocation3 [shape = 's32[1]{0}', space=sflag, size = 0x4, scoped, tag = 'scoped memory for tpu_custom_call.1']
    #allocation4 [shape = 's32[1]{0}', space=sflag, size = 0x4, scoped, tag = 'scoped memory for tpu_custom_call.1']
    #allocation5 [shape = 'u8[16384]{0}', space=vmem, size = 0x4000, scoped, tag = 'input window, operand 1, single buffered']
    #allocation6 [shape = 's32[1]{0}', space=sflag, size = 0x4, scoped, tag = 'scoped memory for tpu_custom_call.1']
    #allocation7 [shape = 'u8[2048]{0}', space=vmem, size = 0x800, scoped, tag = 'input window, operand 2, single buffered']
    #allocation8 [shape = 'u8[393216]{0}', space=vmem, size = 0x60000, scoped, tag = 'input window, operand 3, single buffered']
    #allocation9 [shape = 's32[1]{0}', space=sflag, size = 0x4, scoped, tag = 'scoped memory for tpu_custom_call.1']
    #allocation10 [shape = 'u8[4096]{0}', space=vmem, size = 0x1000, scoped, tag = 'output window, operand 0, single buffered']
    %13 = vsyncpa [#allocation3], 0
    %14 = vsyncpa [#allocation6], 0
    %15 = vsyncpa [#allocation9], 0
    %16 = vsyncpa [#allocation4], 0
    // Predicated region
    $region2: #{tpu_custom_call.1} parent=1 // pred_check
      _
    $region3: #{tpu_custom_call.1} parent=1 // pred_check_branch
      %18 = sbr.rel (0) target = $region5
    $region4: #{tpu_custom_call.1} parent=1 // pred_region
      %s20 = ssub.s32 128, 128
      %21 = vsyncadd [#allocation3], %s20
      %s23 = sshll.u32 [#allocation2], 4
      %s24 = int_to_ptr.vmem [resolvable:$true] %s23
      %26 = dma.hbm_to_vmem [thread:$0]  %s0, 128, %s24, [#allocation3]
    $region5: #{tpu_custom_call.1} parent=1 // pred_fallthru
      _
    // Predicated region
    $region6: #{tpu_custom_call.1} parent=1 // pred_check
      _
    $region7: #{tpu_custom_call.1} parent=1 // pred_check_branch
      %28 = sbr.rel (0) target = $region9
    $region8: #{tpu_custom_call.1} parent=1 // pred_region
      %s30 = ssub.s32 512, 512
      %31 = vsyncadd [#allocation6], %s30
      %s33 = sshll.u32 [#allocation5], 4
      %s34 = int_to_ptr.vmem [resolvable:$true] %s33
      %36 = dma.hbm_to_vmem [thread:$0]  %s1, 512, %s34, [#allocation6]
    $region9: #{tpu_custom_call.1} parent=1 // pred_fallthru
      _
    // Predicated region
    $region10: #{tpu_custom_call.1} parent=1 // pred_check
      _
    $region11: #{tpu_custom_call.1} parent=1 // pred_check_branch
      %38 = sbr.rel (0) target = $region13
    $region12: #{tpu_custom_call.1} parent=1 // pred_region
      %s40 = ssub.s32 64, 64
      %41 = vsyncadd [#allocation6], %s40
      %s43 = sshll.u32 [#allocation7], 4
      %s44 = int_to_ptr.vmem [resolvable:$true] %s43
      %46 = dma.hbm_to_vmem [thread:$0]  %s2, 64, %s44, [#allocation6]
    $region13: #{tpu_custom_call.1} parent=1 // pred_fallthru
      _
    // Predicated region
    $region14: #{tpu_custom_call.1} parent=1 // pred_check
      _
    $region15: #{tpu_custom_call.1} parent=1 // pred_check_branch
      %48 = sbr.rel (0) target = $region17
    $region16: #{tpu_custom_call.1} parent=1 // pred_region
      %s50 = ssub.s32 12288, 12288
      %51 = vsyncadd [#allocation9], %s50
      %s52 = sshll.u32 [#allocation8], 4
      %s53 = int_to_ptr.vmem [resolvable:$true] %s52
      %58 = dma.hbm_to_vmem [thread:$0]  %s3, 12288, %s53, [#allocation9], 192, 192, 12
    $region17: #{tpu_custom_call.1} parent=1 // pred_fallthru
      _
    // Predicated region
    $region18: #{tpu_custom_call.1} parent=1 // pred_check
      _
    $region19: #{tpu_custom_call.1} parent=1 // pred_check_branch
      %60 = sbr.rel (0) target = $region21
    $region20: #{tpu_custom_call.1} parent=1 // pred_region
      _
    $region21: #{tpu_custom_call.1} parent=1 // pred_fallthru
      _
    // Predicated region
    $region22: #{tpu_custom_call.1} parent=1 // pred_check
      _
    $region23: #{tpu_custom_call.1} parent=1 // pred_check_branch
      %62 = sbr.rel (0) target = $region25
    $region24: #{tpu_custom_call.1} parent=1 // pred_region
      _
    $region25: #{tpu_custom_call.1} parent=1 // pred_fallthru
      _
    // Predicated region
    $region26: #{tpu_custom_call.1} parent=1 // pred_check
      _
    $region27: #{tpu_custom_call.1} parent=1 // pred_check_branch
      %64 = sbr.rel (0) target = $region29
    $region28: #{tpu_custom_call.1} parent=1 // pred_region
      _
    $region29: #{tpu_custom_call.1} parent=1 // pred_fallthru
      _
    // Predicated region
    $region30: #{tpu_custom_call.1} parent=1 // pred_check
      _
    $region31: #{tpu_custom_call.1} parent=1 // pred_check_branch
      %66 = sbr.rel (0) target = $region33
    $region32: #{tpu_custom_call.1} parent=1 // pred_region
      _
    $region33: #{tpu_custom_call.1} parent=1 // pred_fallthru
      _
    // Predicated region
    $region34: #{tpu_custom_call.1} parent=1 // pred_check
      _
    $region35: #{tpu_custom_call.1} parent=1 // pred_check_branch
      %68 = sbr.rel (0) target = $region37
    $region36: #{tpu_custom_call.1} parent=1 // pred_region
      %69 = dma.done [#allocation3], 128
    $region37: #{tpu_custom_call.1} parent=1 // pred_fallthru
      _
    // Predicated region
    $region38: #{tpu_custom_call.1} parent=1 // pred_check
      _
    $region39: #{tpu_custom_call.1} parent=1 // pred_check_branch
      %71 = sbr.rel (0) target = $region41
    $region40: #{tpu_custom_call.1} parent=1 // pred_region
      %72 = dma.done [#allocation6], 512
    $region41: #{tpu_custom_call.1} parent=1 // pred_fallthru
      _
    // Predicated region
    $region42: #{tpu_custom_call.1} parent=1 // pred_check
      _
    $region43: #{tpu_custom_call.1} parent=1 // pred_check_branch
      %74 = sbr.rel (0) target = $region45
    $region44: #{tpu_custom_call.1} parent=1 // pred_region
      %75 = dma.done [#allocation6], 64
    $region45: #{tpu_custom_call.1} parent=1 // pred_fallthru
      _
    // Predicated region
    $region46: #{tpu_custom_call.1} parent=1 // pred_check
      _
    $region47: #{tpu_custom_call.1} parent=1 // pred_check_branch
      %77 = sbr.rel (0) target = $region49
    $region48: #{tpu_custom_call.1} parent=1 // pred_region
      %78 = dma.done [#allocation9], 12288
    $region49: #{tpu_custom_call.1} parent=1 // pred_fallthru
      _
    %v80 = vld [vmem:[#allocation2] sm:$0xff]
    %v81 = vld [vmem:[#allocation5] sm:$0xff]
    %v82 = vld [vmem:[#allocation5 + $0x8] sm:$0xff]
    %v83 = vld [vmem:[#allocation5 + $0x10] sm:$0xff]
    %v84 = vld [vmem:[#allocation5 + $0x18] sm:$0xff]
    %v85 = vld [vmem:[#allocation7] sm:$0xf]
    %v87 = vlaneseq
    %v88 = vshrl.u32 %v87, 7
    %v89 = vsub.s32 0, %v88
    %v90 = vrot.slane %v85, %v89
    %v91 = vlaneseq
    %v92 = vshrl.u32 %v91, 7
    %v93 = vsub.s32 1, %v92
    %v94 = vrot.slane %v85, %v93
    %v95 = vlaneseq
    %v96 = vshrl.u32 %v95, 7
    %v97 = vsub.s32 2, %v96
    %v98 = vrot.slane %v85, %v97
    %v99 = vlaneseq
    %v100 = vshrl.u32 %v99, 7
    %v101 = vsub.s32 3, %v100
    %v102 = vrot.slane %v85, %v101
    %vm107 = vcmask 64512
    %v109 = vsel %vm107, %v80, 0
    %111 = vmatprep.subr.mxu0 0.0
    %112 = vmatpush1.msra.mxu0 0.0
    %113 = vmatprep.subr.mxu0 0.0
    %114 = vmatpush1.msra.mxu0 0.0
    %115 = vmatprep.subr.mxu0 0.0
    %116 = vmatpush1.msra.mxu0 0.0
    %117 = vmatprep.subr.mxu0 0.0
    %118 = vmatpush1.msra.mxu0 0.0
    %119 = vmatprep.subr.mxu0 0.0
    %120 = vmatpush1.msra.mxu0 0.0
    %121 = vmatprep.subr.mxu0 0.0
    %122 = vmatpush1.msra.mxu0 0.0
    %123 = vmatprep.subr.mxu0 0.0
    %124 = vmatpush1.msra.mxu0 0.0
    %125 = vmatprep.subr.mxu0 0.0
    %126 = vmatpush1.msra.mxu0 0.0
    %127 = vmatprep.subr.mxu0 0.0
    %128 = vmatpush1.msra.mxu0 0.0
    %129 = vmatprep.subr.mxu0 0.0
    %130 = vmatpush1.msra.mxu0 0.0
    %131 = vmatprep.subr.mxu0 0.0
    %132 = vmatpush1.msra.mxu0 0.0
    %133 = vmatprep.subr.mxu0 0.0
    %134 = vmatpush1.msra.mxu0 0.0
    %135 = vmatprep.subr.mxu0 0.0
    %136 = vmatpush1.msra.mxu0 0.0
    %137 = vmatprep.subr.mxu0 0.0
    %138 = vmatpush1.msra.mxu0 0.0
    %139 = vmatprep.subr.mxu0 0.0
    %140 = vmatpush1.msra.mxu0 0.0
    %141 = vmatprep.subr.mxu0 %v82
    %142 = vmatpush1.msra.mxu0 %v81
    %143 = vmatprep.subr.mxu0 0.0
    %144 = vmatpush2.msra.mxu0 0.0
    %145 = vmatprep.subr.mxu0 0.0
    %146 = vmatpush2.msra.mxu0 0.0
    %147 = vmatprep.subr.mxu0 0.0
    %148 = vmatpush2.msra.mxu0 0.0
    %149 = vmatprep.subr.mxu0 0.0
    %150 = vmatpush2.msra.mxu0 0.0
    %151 = vmatprep.subr.mxu0 0.0
    %152 = vmatpush2.msra.mxu0 0.0
    %153 = vmatprep.subr.mxu0 0.0
    %154 = vmatpush2.msra.mxu0 0.0
    %155 = vmatprep.subr.mxu0 0.0
    %156 = vmatpush2.msra.mxu0 0.0
    %157 = vmatprep.subr.mxu0 0.0
    %158 = vmatpush2.msra.mxu0 0.0
    %159 = vmatprep.subr.mxu0 0.0
    %160 = vmatpush2.msra.mxu0 0.0
    %161 = vmatprep.subr.mxu0 0.0
    %162 = vmatpush2.msra.mxu0 0.0
    %163 = vmatprep.subr.mxu0 0.0
    %164 = vmatpush2.msra.mxu0 0.0
    %165 = vmatprep.subr.mxu0 0.0
    %166 = vmatpush2.msra.mxu0 0.0
    %167 = vmatprep.subr.mxu0 0.0
    %168 = vmatpush2.msra.mxu0 0.0
    %169 = vmatprep.subr.mxu0 0.0
    %170 = vmatpush2.msra.mxu0 0.0
    %171 = vmatprep.subr.mxu0 0.0
    %172 = vmatpush2.msra.mxu0 0.0
    %173 = vmatprep.subr.mxu0 0.0
    %174 = vmatpush2.msra.mxu0 0.0
    %175 = vmatprep.mubr.f32.mxu0 0.0
    %176 = vmatmul.mubr.f32.gmra.mxu0 %v109
    %v177 = vpop.f32.mrf.mxu0
    %v178 = vadd.f32 %v90, %v177
    %v179 = vpop.f32.mrf.mxu0
    %v180 = vadd.f32 %v94, %v179
    %181 = vdwg.mxu0
    %182 = vmatprep.subr.mxu0 0.0
    %183 = vmatpush1.msra.mxu0 0.0
    %184 = vmatprep.subr.mxu0 0.0
    %185 = vmatpush1.msra.mxu0 0.0
    %186 = vmatprep.subr.mxu0 0.0
    %187 = vmatpush1.msra.mxu0 0.0
    %188 = vmatprep.subr.mxu0 0.0
    %189 = vmatpush1.msra.mxu0 0.0
    %190 = vmatprep.subr.mxu0 0.0
    %191 = vmatpush1.msra.mxu0 0.0
    %192 = vmatprep.subr.mxu0 0.0
    %193 = vmatpush1.msra.mxu0 0.0
    %194 = vmatprep.subr.mxu0 0.0
    %195 = vmatpush1.msra.mxu0 0.0
    %196 = vmatprep.subr.mxu0 0.0
    %197 = vmatpush1.msra.mxu0 0.0
    %198 = vmatprep.subr.mxu0 0.0
    %199 = vmatpush1.msra.mxu0 0.0
    %200 = vmatprep.subr.mxu0 0.0
    %201 = vmatpush1.msra.mxu0 0.0
    %202 = vmatprep.subr.mxu0 0.0
    %203 = vmatpush1.msra.mxu0 0.0
    %204 = vmatprep.subr.mxu0 0.0
    %205 = vmatpush1.msra.mxu0 0.0
    %206 = vmatprep.subr.mxu0 0.0
    %207 = vmatpush1.msra.mxu0 0.0
    %208 = vmatprep.subr.mxu0 0.0
    %209 = vmatpush1.msra.mxu0 0.0
    %210 = vmatprep.subr.mxu0 0.0
    %211 = vmatpush1.msra.mxu0 0.0
    %212 = vmatprep.subr.mxu0 %v84
    %213 = vmatpush1.msra.mxu0 %v83
    %214 = vmatprep.subr.mxu0 0.0
    %215 = vmatpush2.msra.mxu0 0.0
    %216 = vmatprep.subr.mxu0 0.0
    %217 = vmatpush2.msra.mxu0 0.0
    %218 = vmatprep.subr.mxu0 0.0
    %219 = vmatpush2.msra.mxu0 0.0
    %220 = vmatprep.subr.mxu0 0.0
    %221 = vmatpush2.msra.mxu0 0.0
    %222 = vmatprep.subr.mxu0 0.0
    %223 = vmatpush2.msra.mxu0 0.0
    %224 = vmatprep.subr.mxu0 0.0
    %225 = vmatpush2.msra.mxu0 0.0
    %226 = vmatprep.subr.mxu0 0.0
    %227 = vmatpush2.msra.mxu0 0.0
    %228 = vmatprep.subr.mxu0 0.0
    %229 = vmatpush2.msra.mxu0 0.0
    %230 = vmatprep.subr.mxu0 0.0
    %231 = vmatpush2.msra.mxu0 0.0
    %232 = vmatprep.subr.mxu0 0.0
    %233 = vmatpush2.msra.mxu0 0.0
    %234 = vmatprep.subr.mxu0 0.0
    %235 = vmatpush2.msra.mxu0 0.0
    %236 = vmatprep.subr.mxu0 0.0
    %237 = vmatpush2.msra.mxu0 0.0
    %238 = vmatprep.subr.mxu0 0.0
    %239 = vmatpush2.msra.mxu0 0.0
    %240 = vmatprep.subr.mxu0 0.0
    %241 = vmatpush2.msra.mxu0 0.0
    %242 = vmatprep.subr.mxu0 0.0
    %243 = vmatpush2.msra.mxu0 0.0
    %244 = vmatprep.subr.mxu0 0.0
    %245 = vmatpush2.msra.mxu0 0.0
    %246 = vmatprep.mubr.f32.mxu0 0.0
    %247 = vmatmul.mubr.f32.gmra.mxu0 %v109
    %v248 = vpop.f32.mrf.mxu0
    %v249 = vadd.f32 %v98, %v248
    %v250 = vpop.f32.mrf.mxu0
    %v251 = vadd.f32 %v102, %v250
    %252 = vdwg.mxu0
    %v253 = vmax.f32 %v178, 0.0
    %v254 = vmax.f32 %v180, 0.0
    %v255 = vmax.f32 %v249, 0.0
    %v256 = vmax.f32 %v251, 0.0
    %v257 = vpack.c.bf16 %v253, %v253
    %v258 = vpack.c.bf16 %v254, %v254
    %v259 = vpack.c.bf16 %v255, %v255
    %v260 = vpack.c.bf16 %v256, %v256
    %v261 = vld [vmem:[#allocation8] sm:$0xff]
    %v262 = vld [vmem:[#allocation8 + $0x8] sm:$0xf]
    %v263 = vld [vmem:[#allocation8 + $0xc] sm:$0xff]
    %v264 = vld [vmem:[#allocation8 + $0x14] sm:$0xf]
    %v265 = vld [vmem:[#allocation8 + $0x18] sm:$0xff]
    %v266 = vld [vmem:[#allocation8 + $0x20] sm:$0xf]
    %v267 = vld [vmem:[#allocation8 + $0x24] sm:$0xff]
    %v268 = vld [vmem:[#allocation8 + $0x2c] sm:$0xf]
    %v269 = vld [vmem:[#allocation8 + $0x30] sm:$0xff]
    %v270 = vld [vmem:[#allocation8 + $0x38] sm:$0xf]
    %v271 = vld [vmem:[#allocation8 + $0x3c] sm:$0xff]
    %v272 = vld [vmem:[#allocation8 + $0x44] sm:$0xf]
    %v273 = vld [vmem:[#allocation8 + $0x48] sm:$0xff]
    %v274 = vld [vmem:[#allocation8 + $0x50] sm:$0xf]
    %v275 = vld [vmem:[#allocation8 + $0x54] sm:$0xff]
    %v276 = vld [vmem:[#allocation8 + $0x5c] sm:$0xf]
    %v277 = vld [vmem:[#allocation8 + $0x60] sm:$0xff]
    %v278 = vld [vmem:[#allocation8 + $0x68] sm:$0xf]
    %v279 = vld [vmem:[#allocation8 + $0x6c] sm:$0xff]
    %v280 = vld [vmem:[#allocation8 + $0x74] sm:$0xf]
    %v281 = vld [vmem:[#allocation8 + $0x78] sm:$0xff]
    %v282 = vld [vmem:[#allocation8 + $0x80] sm:$0xf]
    %v283 = vld [vmem:[#allocation8 + $0x84] sm:$0xff]
    %v284 = vld [vmem:[#allocation8 + $0x8c] sm:$0xf]
    %v285 = vld [vmem:[#allocation8 + $0x90] sm:$0xff]
    %v286 = vld [vmem:[#allocation8 + $0x98] sm:$0xf]
    %v287 = vld [vmem:[#allocation8 + $0x9c] sm:$0xff]
    %v288 = vld [vmem:[#allocation8 + $0xa4] sm:$0xf]
    %v289 = vld [vmem:[#allocation8 + $0xa8] sm:$0xff]
    %v290 = vld [vmem:[#allocation8 + $0xb0] sm:$0xf]
    %v291 = vld [vmem:[#allocation8 + $0xb4] sm:$0xff]
    %v292 = vld [vmem:[#allocation8 + $0xbc] sm:$0xf]
    %v293 = vld [vmem:[#allocation8 + $0xc0] sm:$0xff]
    %v294 = vld [vmem:[#allocation8 + $0xc8] sm:$0xf]
    %v295 = vld [vmem:[#allocation8 + $0xcc] sm:$0xff]
    %v296 = vld [vmem:[#allocation8 + $0xd4] sm:$0xf]
    %v297 = vld [vmem:[#allocation8 + $0xd8] sm:$0xff]
    %v298 = vld [vmem:[#allocation8 + $0xe0] sm:$0xf]
    %v299 = vld [vmem:[#allocation8 + $0xe4] sm:$0xff]
    %v300 = vld [vmem:[#allocation8 + $0xec] sm:$0xf]
    %v301 = vld [vmem:[#allocation8 + $0xf0] sm:$0xff]
    %v302 = vld [vmem:[#allocation8 + $0xf8] sm:$0xf]
    %v303 = vld [vmem:[#allocation8 + $0xfc] sm:$0xff]
    %v304 = vld [vmem:[#allocation8 + $0x104] sm:$0xf]
    %v305 = vld [vmem:[#allocation8 + $0x108] sm:$0xff]
    %v306 = vld [vmem:[#allocation8 + $0x110] sm:$0xf]
    %v307 = vld [vmem:[#allocation8 + $0x114] sm:$0xff]
    %v308 = vld [vmem:[#allocation8 + $0x11c] sm:$0xf]
    %v309 = vld [vmem:[#allocation8 + $0x120] sm:$0xff]
    %v310 = vld [vmem:[#allocation8 + $0x128] sm:$0xf]
    %v311 = vld [vmem:[#allocation8 + $0x12c] sm:$0xff]
    %v312 = vld [vmem:[#allocation8 + $0x134] sm:$0xf]
    %v313 = vld [vmem:[#allocation8 + $0x138] sm:$0xff]
    %v314 = vld [vmem:[#allocation8 + $0x140] sm:$0xf]
    %v315 = vld [vmem:[#allocation8 + $0x144] sm:$0xff]
    %v316 = vld [vmem:[#allocation8 + $0x14c] sm:$0xf]
    %v317 = vld [vmem:[#allocation8 + $0x150] sm:$0xff]
    %v318 = vld [vmem:[#allocation8 + $0x158] sm:$0xf]
    %v319 = vld [vmem:[#allocation8 + $0x15c] sm:$0xff]
    %v320 = vld [vmem:[#allocation8 + $0x164] sm:$0xf]
    %v321 = vld [vmem:[#allocation8 + $0x168] sm:$0xff]
    %v322 = vld [vmem:[#allocation8 + $0x170] sm:$0xf]
    %v323 = vld [vmem:[#allocation8 + $0x174] sm:$0xff]
    %v324 = vld [vmem:[#allocation8 + $0x17c] sm:$0xf]
    %v325 = vld [vmem:[#allocation8 + $0x180] sm:$0xff]
    %v326 = vld [vmem:[#allocation8 + $0x188] sm:$0xf]
    %v327 = vld [vmem:[#allocation8 + $0x18c] sm:$0xff]
    %v328 = vld [vmem:[#allocation8 + $0x194] sm:$0xf]
    %v329 = vld [vmem:[#allocation8 + $0x198] sm:$0xff]
    %v330 = vld [vmem:[#allocation8 + $0x1a0] sm:$0xf]
    %v331 = vld [vmem:[#allocation8 + $0x1a4] sm:$0xff]
    %v332 = vld [vmem:[#allocation8 + $0x1ac] sm:$0xf]
    %v333 = vld [vmem:[#allocation8 + $0x1b0] sm:$0xff]
    %v334 = vld [vmem:[#allocation8 + $0x1b8] sm:$0xf]
    %v335 = vld [vmem:[#allocation8 + $0x1bc] sm:$0xff]
    %v336 = vld [vmem:[#allocation8 + $0x1c4] sm:$0xf]
    %v337 = vld [vmem:[#allocation8 + $0x1c8] sm:$0xff]
    %v338 = vld [vmem:[#allocation8 + $0x1d0] sm:$0xf]
    %v339 = vld [vmem:[#allocation8 + $0x1d4] sm:$0xff]
    %v340 = vld [vmem:[#allocation8 + $0x1dc] sm:$0xf]
    %v341 = vld [vmem:[#allocation8 + $0x1e0] sm:$0xff]
    %v342 = vld [vmem:[#allocation8 + $0x1e8] sm:$0xf]
    %v343 = vld [vmem:[#allocation8 + $0x1ec] sm:$0xff]
    %v344 = vld [vmem:[#allocation8 + $0x1f4] sm:$0xf]
    %v345 = vld [vmem:[#allocation8 + $0x1f8] sm:$0xff]
    %v346 = vld [vmem:[#allocation8 + $0x200] sm:$0xf]
    %v347 = vld [vmem:[#allocation8 + $0x204] sm:$0xff]
    %v348 = vld [vmem:[#allocation8 + $0x20c] sm:$0xf]
    %v349 = vld [vmem:[#allocation8 + $0x210] sm:$0xff]
    %v350 = vld [vmem:[#allocation8 + $0x218] sm:$0xf]
    %v351 = vld [vmem:[#allocation8 + $0x21c] sm:$0xff]
    %v352 = vld [vmem:[#allocation8 + $0x224] sm:$0xf]
    %v353 = vld [vmem:[#allocation8 + $0x228] sm:$0xff]
    %v354 = vld [vmem:[#allocation8 + $0x230] sm:$0xf]
    %v355 = vld [vmem:[#allocation8 + $0x234] sm:$0xff]
    %v356 = vld [vmem:[#allocation8 + $0x23c] sm:$0xf]
    %v357 = vld [vmem:[#allocation8 + $0x240] sm:$0xff]
    %v358 = vld [vmem:[#allocation8 + $0x248] sm:$0xf]
    %v359 = vld [vmem:[#allocation8 + $0x24c] sm:$0xff]
    %v360 = vld [vmem:[#allocation8 + $0x254] sm:$0xf]
    %v361 = vld [vmem:[#allocation8 + $0x258] sm:$0xff]
    %v362 = vld [vmem:[#allocation8 + $0x260] sm:$0xf]
    %v363 = vld [vmem:[#allocation8 + $0x264] sm:$0xff]
    %v364 = vld [vmem:[#allocation8 + $0x26c] sm:$0xf]
    %v365 = vld [vmem:[#allocation8 + $0x270] sm:$0xff]
    %v366 = vld [vmem:[#allocation8 + $0x278] sm:$0xf]
    %v367 = vld [vmem:[#allocation8 + $0x27c] sm:$0xff]
    %v368 = vld [vmem:[#allocation8 + $0x284] sm:$0xf]
    %v369 = vld [vmem:[#allocation8 + $0x288] sm:$0xff]
    %v370 = vld [vmem:[#allocation8 + $0x290] sm:$0xf]
    %v371 = vld [vmem:[#allocation8 + $0x294] sm:$0xff]
    %v372 = vld [vmem:[#allocation8 + $0x29c] sm:$0xf]
    %v373 = vld [vmem:[#allocation8 + $0x2a0] sm:$0xff]
    %v374 = vld [vmem:[#allocation8 + $0x2a8] sm:$0xf]
    %v375 = vld [vmem:[#allocation8 + $0x2ac] sm:$0xff]
    %v376 = vld [vmem:[#allocation8 + $0x2b4] sm:$0xf]
    %v377 = vld [vmem:[#allocation8 + $0x2b8] sm:$0xff]
    %v378 = vld [vmem:[#allocation8 + $0x2c0] sm:$0xf]
    %v379 = vld [vmem:[#allocation8 + $0x2c4] sm:$0xff]
    %v380 = vld [vmem:[#allocation8 + $0x2cc] sm:$0xf]
    %v381 = vld [vmem:[#allocation8 + $0x2d0] sm:$0xff]
    %v382 = vld [vmem:[#allocation8 + $0x2d8] sm:$0xf]
    %v383 = vld [vmem:[#allocation8 + $0x2dc] sm:$0xff]
    %v384 = vld [vmem:[#allocation8 + $0x2e4] sm:$0xf]
    %v385 = vld [vmem:[#allocation8 + $0x2e8] sm:$0xff]
    %v386 = vld [vmem:[#allocation8 + $0x2f0] sm:$0xf]
    %v387 = vld [vmem:[#allocation8 + $0x2f4] sm:$0xff]
    %v388 = vld [vmem:[#allocation8 + $0x2fc] sm:$0xf]
    %v389 = vld [vmem:[%s4] sm:$0x7]
    %390 = vset.pattern.permute.xlu0 3
    %391 = vperm.xlu0 %390, %v80
    %v392 = vpop.permute.xlu0 %391
    %v395 = vlaneseq
    %v396 = vshrl.u32 %v395, 7
    %v397 = vsub.s32 0, %v396
    %v398 = vrot.slane %v389, %v397
    %v399 = vlaneseq
    %v400 = vshrl.u32 %v399, 7
    %v401 = vsub.s32 1, %v400
    %v402 = vrot.slane %v389, %v401
    %v403 = vlaneseq
    %v404 = vshrl.u32 %v403, 7
    %v405 = vsub.s32 2, %v404
    %v406 = vrot.slane %v389, %v405
    %v410 = vmul.f32 %v392, %v398
    %v411 = vmul.f32 %v392, %v402
    %v412 = vmul.f32 %v392, %v406
    %v541 = vunpack.c.l.b16 %v261
    %v542 = vunpack.c.h.b16 %v261
    %v543 = vunpack.c.l.b16 %v262
    %v544 = vunpack.c.l.b16 %v263
    %v545 = vunpack.c.h.b16 %v263
    %v546 = vunpack.c.l.b16 %v264
    %v547 = vunpack.c.l.b16 %v265
    %v548 = vunpack.c.h.b16 %v265
    %v549 = vunpack.c.l.b16 %v266
    %v550 = vunpack.c.l.b16 %v267
    %v551 = vunpack.c.h.b16 %v267
    %v552 = vunpack.c.l.b16 %v268
    %v553 = vunpack.c.l.b16 %v269
    %v554 = vunpack.c.h.b16 %v269
    %v555 = vunpack.c.l.b16 %v270
    %v556 = vunpack.c.l.b16 %v271
    %v557 = vunpack.c.h.b16 %v271
    %v558 = vunpack.c.l.b16 %v272
    %v559 = vunpack.c.l.b16 %v273
    %v560 = vunpack.c.h.b16 %v273
    %v561 = vunpack.c.l.b16 %v274
    %v562 = vunpack.c.l.b16 %v275
    %v563 = vunpack.c.h.b16 %v275
    %v564 = vunpack.c.l.b16 %v276
    %v565 = vunpack.c.l.b16 %v277
    %v566 = vunpack.c.h.b16 %v277
    %v567 = vunpack.c.l.b16 %v278
    %v568 = vunpack.c.l.b16 %v279
    %v569 = vunpack.c.h.b16 %v279
    %v570 = vunpack.c.l.b16 %v280
    %v571 = vunpack.c.l.b16 %v281
    %v572 = vunpack.c.h.b16 %v281
    %v573 = vunpack.c.l.b16 %v282
    %v574 = vunpack.c.l.b16 %v283
    %v575 = vunpack.c.h.b16 %v283
    %v576 = vunpack.c.l.b16 %v284
    %v577 = vunpack.c.l.b16 %v285
    %v578 = vunpack.c.h.b16 %v285
    %v579 = vunpack.c.l.b16 %v286
    %v580 = vunpack.c.l.b16 %v287
    %v581 = vunpack.c.h.b16 %v287
    %v582 = vunpack.c.l.b16 %v288
    %v583 = vunpack.c.l.b16 %v289
    %v584 = vunpack.c.h.b16 %v289
    %v585 = vunpack.c.l.b16 %v290
    %v586 = vunpack.c.l.b16 %v291
    %v587 = vunpack.c.h.b16 %v291
    %v588 = vunpack.c.l.b16 %v292
    %v589 = vunpack.c.l.b16 %v293
    %v590 = vunpack.c.h.b16 %v293
    %v591 = vunpack.c.l.b16 %v294
    %v592 = vunpack.c.l.b16 %v295
    %v593 = vunpack.c.h.b16 %v295
    %v594 = vunpack.c.l.b16 %v296
    %v595 = vunpack.c.l.b16 %v297
    %v596 = vunpack.c.h.b16 %v297
    %v597 = vunpack.c.l.b16 %v298
    %v598 = vunpack.c.l.b16 %v299
    %v599 = vunpack.c.h.b16 %v299
    %v600 = vunpack.c.l.b16 %v300
    %v601 = vunpack.c.l.b16 %v301
    %v602 = vunpack.c.h.b16 %v301
    %v603 = vunpack.c.l.b16 %v302
    %v604 = vunpack.c.l.b16 %v303
    %v605 = vunpack.c.h.b16 %v303
    %v606 = vunpack.c.l.b16 %v304
    %v607 = vunpack.c.l.b16 %v305
    %v608 = vunpack.c.h.b16 %v305
    %v609 = vunpack.c.l.b16 %v306
    %v610 = vunpack.c.l.b16 %v307
    %v611 = vunpack.c.h.b16 %v307
    %v612 = vunpack.c.l.b16 %v308
    %v613 = vunpack.c.l.b16 %v309
    %v614 = vunpack.c.h.b16 %v309
    %v615 = vunpack.c.l.b16 %v310
    %v616 = vunpack.c.l.b16 %v311
    %v617 = vunpack.c.h.b16 %v311
    %v618 = vunpack.c.l.b16 %v312
    %v619 = vunpack.c.l.b16 %v313
    %v620 = vunpack.c.h.b16 %v313
    %v621 = vunpack.c.l.b16 %v314
    %v622 = vunpack.c.l.b16 %v315
    %v623 = vunpack.c.h.b16 %v315
    %v624 = vunpack.c.l.b16 %v316
    %v625 = vunpack.c.l.b16 %v317
    %v626 = vunpack.c.h.b16 %v317
    %v627 = vunpack.c.l.b16 %v318
    %v628 = vunpack.c.l.b16 %v319
    %v629 = vunpack.c.h.b16 %v319
    %v630 = vunpack.c.l.b16 %v320
    %v631 = vunpack.c.l.b16 %v321
    %v632 = vunpack.c.h.b16 %v321
    %v633 = vunpack.c.l.b16 %v322
    %v634 = vunpack.c.l.b16 %v323
    %v635 = vunpack.c.h.b16 %v323
    %v636 = vunpack.c.l.b16 %v324
    %v637 = vunpack.c.l.b16 %v325
    %v638 = vunpack.c.h.b16 %v325
    %v639 = vunpack.c.l.b16 %v326
    %v640 = vunpack.c.l.b16 %v327
    %v641 = vunpack.c.h.b16 %v327
    %v642 = vunpack.c.l.b16 %v328
    %v643 = vunpack.c.l.b16 %v329
    %v644 = vunpack.c.h.b16 %v329
    %v645 = vunpack.c.l.b16 %v330
    %v646 = vunpack.c.l.b16 %v331
    %v647 = vunpack.c.h.b16 %v331
    %v648 = vunpack.c.l.b16 %v332
    %v649 = vunpack.c.l.b16 %v333
    %v650 = vunpack.c.h.b16 %v333
    %v651 = vunpack.c.l.b16 %v334
    %v652 = vunpack.c.l.b16 %v335
    %v653 = vunpack.c.h.b16 %v335
    %v654 = vunpack.c.l.b16 %v336
    %v655 = vunpack.c.l.b16 %v337
    %v656 = vunpack.c.h.b16 %v337
    %v657 = vunpack.c.l.b16 %v338
    %v658 = vunpack.c.l.b16 %v339
    %v659 = vunpack.c.h.b16 %v339
    %v660 = vunpack.c.l.b16 %v340
    %v661 = vunpack.c.l.b16 %v341
    %v662 = vunpack.c.h.b16 %v341
    %v663 = vunpack.c.l.b16 %v342
    %v664 = vunpack.c.l.b16 %v343
    %v665 = vunpack.c.h.b16 %v343
    %v666 = vunpack.c.l.b16 %v344
    %v667 = vunpack.c.l.b16 %v345
    %v668 = vunpack.c.h.b16 %v345
    %v669 = vunpack.c.l.b16 %v346
    %v670 = vunpack.c.l.b16 %v347
    %v671 = vunpack.c.h.b16 %v347
    %v672 = vunpack.c.l.b16 %v348
    %v673 = vunpack.c.l.b16 %v349
    %v674 = vunpack.c.h.b16 %v349
    %v675 = vunpack.c.l.b16 %v350
    %v676 = vunpack.c.l.b16 %v351
    %v677 = vunpack.c.h.b16 %v351
    %v678 = vunpack.c.l.b16 %v352
    %v679 = vunpack.c.l.b16 %v353
    %v680 = vunpack.c.h.b16 %v353
    %v681 = vunpack.c.l.b16 %v354
    %v682 = vunpack.c.l.b16 %v355
    %v683 = vunpack.c.h.b16 %v355
    %v684 = vunpack.c.l.b16 %v356
    %v685 = vunpack.c.l.b16 %v357
    %v686 = vunpack.c.h.b16 %v357
    %v687 = vunpack.c.l.b16 %v358
    %v688 = vunpack.c.l.b16 %v359
    %v689 = vunpack.c.h.b16 %v359
    %v690 = vunpack.c.l.b16 %v360
    %v691 = vunpack.c.l.b16 %v361
    %v692 = vunpack.c.h.b16 %v361
    %v693 = vunpack.c.l.b16 %v362
    %v694 = vunpack.c.l.b16 %v363
    %v695 = vunpack.c.h.b16 %v363
    %v696 = vunpack.c.l.b16 %v364
    %v697 = vunpack.c.l.b16 %v365
    %v698 = vunpack.c.h.b16 %v365
    %v699 = vunpack.c.l.b16 %v366
    %v700 = vunpack.c.l.b16 %v367
    %v701 = vunpack.c.h.b16 %v367
    %v702 = vunpack.c.l.b16 %v368
    %v703 = vunpack.c.l.b16 %v369
    %v704 = vunpack.c.h.b16 %v369
    %v705 = vunpack.c.l.b16 %v370
    %v706 = vunpack.c.l.b16 %v371
    %v707 = vunpack.c.h.b16 %v371
    %v708 = vunpack.c.l.b16 %v372
    %v709 = vunpack.c.l.b16 %v373
    %v710 = vunpack.c.h.b16 %v373
    %v711 = vunpack.c.l.b16 %v374
    %v712 = vunpack.c.l.b16 %v375
    %v713 = vunpack.c.h.b16 %v375
    %v714 = vunpack.c.l.b16 %v376
    %v715 = vunpack.c.l.b16 %v377
    %v716 = vunpack.c.h.b16 %v377
    %v717 = vunpack.c.l.b16 %v378
    %v718 = vunpack.c.l.b16 %v379
    %v719 = vunpack.c.h.b16 %v379
    %v720 = vunpack.c.l.b16 %v380
    %v721 = vunpack.c.l.b16 %v381
    %v722 = vunpack.c.h.b16 %v381
    %v723 = vunpack.c.l.b16 %v382
    %v724 = vunpack.c.l.b16 %v383
    %v725 = vunpack.c.h.b16 %v383
    %v726 = vunpack.c.l.b16 %v384
    %v727 = vunpack.c.l.b16 %v385
    %v728 = vunpack.c.h.b16 %v385
    %v729 = vunpack.c.l.b16 %v386
    %v730 = vunpack.c.l.b16 %v387
    %v731 = vunpack.c.h.b16 %v387
    %v732 = vunpack.c.l.b16 %v388
    %v733 = vpack.c.b16 %v544, %v541
    %v734 = vpack.c.b16 %v545, %v542
    %v735 = vpack.c.b16 %v546, %v543
    %v736 = vpack.c.b16 %v550, %v547
    %v737 = vpack.c.b16 %v551, %v548
    %v738 = vpack.c.b16 %v552, %v549
    %v739 = vpack.c.b16 %v556, %v553
    %v740 = vpack.c.b16 %v557, %v554
    %v741 = vpack.c.b16 %v558, %v555
    %v742 = vpack.c.b16 %v562, %v559
    %v743 = vpack.c.b16 %v563, %v560
    %v744 = vpack.c.b16 %v564, %v561
    %v745 = vpack.c.b16 %v568, %v565
    %v746 = vpack.c.b16 %v569, %v566
    %v747 = vpack.c.b16 %v570, %v567
    %v748 = vpack.c.b16 %v574, %v571
    %v749 = vpack.c.b16 %v575, %v572
    %v750 = vpack.c.b16 %v576, %v573
    %v751 = vpack.c.b16 %v580, %v577
    %v752 = vpack.c.b16 %v581, %v578
    %v753 = vpack.c.b16 %v582, %v579
    %v754 = vpack.c.b16 %v586, %v583
    %v755 = vpack.c.b16 %v587, %v584
    %v756 = vpack.c.b16 %v588, %v585
    %v757 = vpack.c.b16 %v592, %v589
    %v758 = vpack.c.b16 %v593, %v590
    %v759 = vpack.c.b16 %v594, %v591
    %v760 = vpack.c.b16 %v598, %v595
    %v761 = vpack.c.b16 %v599, %v596
    %v762 = vpack.c.b16 %v600, %v597
    %v763 = vpack.c.b16 %v604, %v601
    %v764 = vpack.c.b16 %v605, %v602
    %v765 = vpack.c.b16 %v606, %v603
    %v766 = vpack.c.b16 %v610, %v607
    %v767 = vpack.c.b16 %v611, %v608
    %v768 = vpack.c.b16 %v612, %v609
    %v769 = vpack.c.b16 %v616, %v613
    %v770 = vpack.c.b16 %v617, %v614
    %v771 = vpack.c.b16 %v618, %v615
    %v772 = vpack.c.b16 %v622, %v619
    %v773 = vpack.c.b16 %v623, %v620
    %v774 = vpack.c.b16 %v624, %v621
    %v775 = vpack.c.b16 %v628, %v625
    %v776 = vpack.c.b16 %v629, %v626
    %v777 = vpack.c.b16 %v630, %v627
    %v778 = vpack.c.b16 %v634, %v631
    %v779 = vpack.c.b16 %v635, %v632
    %v780 = vpack.c.b16 %v636, %v633
    %v781 = vpack.c.b16 %v640, %v637
    %v782 = vpack.c.b16 %v641, %v638
    %v783 = vpack.c.b16 %v642, %v639
    %v784 = vpack.c.b16 %v646, %v643
    %v785 = vpack.c.b16 %v647, %v644
    %v786 = vpack.c.b16 %v648, %v645
    %v787 = vpack.c.b16 %v652, %v649
    %v788 = vpack.c.b16 %v653, %v650
    %v789 = vpack.c.b16 %v654, %v651
    %v790 = vpack.c.b16 %v658, %v655
    %v791 = vpack.c.b16 %v659, %v656
    %v792 = vpack.c.b16 %v660, %v657
    %v793 = vpack.c.b16 %v664, %v661
    %v794 = vpack.c.b16 %v665, %v662
    %v795 = vpack.c.b16 %v666, %v663
    %v796 = vpack.c.b16 %v670, %v667
    %v797 = vpack.c.b16 %v671, %v668
    %v798 = vpack.c.b16 %v672, %v669
    %v799 = vpack.c.b16 %v676, %v673
    %v800 = vpack.c.b16 %v677, %v674
    %v801 = vpack.c.b16 %v678, %v675
    %v802 = vpack.c.b16 %v682, %v679
    %v803 = vpack.c.b16 %v683, %v680
    %v804 = vpack.c.b16 %v684, %v681
    %v805 = vpack.c.b16 %v688, %v685
    %v806 = vpack.c.b16 %v689, %v686
    %v807 = vpack.c.b16 %v690, %v687
    %v808 = vpack.c.b16 %v694, %v691
    %v809 = vpack.c.b16 %v695, %v692
    %v810 = vpack.c.b16 %v696, %v693
    %v811 = vpack.c.b16 %v700, %v697
    %v812 = vpack.c.b16 %v701, %v698
    %v813 = vpack.c.b16 %v702, %v699
    %v814 = vpack.c.b16 %v706, %v703
    %v815 = vpack.c.b16 %v707, %v704
    %v816 = vpack.c.b16 %v708, %v705
    %v817 = vpack.c.b16 %v712, %v709
    %v818 = vpack.c.b16 %v713, %v710
    %v819 = vpack.c.b16 %v714, %v711
    %v820 = vpack.c.b16 %v718, %v715
    %v821 = vpack.c.b16 %v719, %v716
    %v822 = vpack.c.b16 %v720, %v717
    %v823 = vpack.c.b16 %v724, %v721
    %v824 = vpack.c.b16 %v725, %v722
    %v825 = vpack.c.b16 %v726, %v723
    %v826 = vpack.c.b16 %v730, %v727
    %v827 = vpack.c.b16 %v731, %v728
    %v828 = vpack.c.b16 %v732, %v729
    %925 = vmatprep.subr.bf16.mxu0 %v755
    %926 = vmatpush1.bf16.msra.mxu0 %v754
    %927 = vmatprep.subr.bf16.mxu0 %v752
    %928 = vmatpush1.bf16.msra.mxu0 %v751
    %929 = vmatprep.subr.bf16.mxu0 %v749
    %930 = vmatpush1.bf16.msra.mxu0 %v748
    %931 = vmatprep.subr.bf16.mxu0 %v746
    %932 = vmatpush1.bf16.msra.mxu0 %v745
    %933 = vmatprep.subr.bf16.mxu0 %v743
    %934 = vmatpush1.bf16.msra.mxu0 %v742
    %935 = vmatprep.subr.bf16.mxu0 %v740
    %936 = vmatpush1.bf16.msra.mxu0 %v739
    %937 = vmatprep.subr.bf16.mxu0 %v737
    %938 = vmatpush1.bf16.msra.mxu0 %v736
    %939 = vmatprep.subr.bf16.mxu0 %v734
    %940 = vmatpush1.bf16.msra.mxu0 %v733
    %941 = vmatprep.subr.bf16.mxu0 %v779
    %942 = vmatpush2.bf16.msra.mxu0 %v778
    %943 = vmatprep.subr.bf16.mxu0 %v776
    %944 = vmatpush2.bf16.msra.mxu0 %v775
    %945 = vmatprep.subr.bf16.mxu0 %v773
    %946 = vmatpush2.bf16.msra.mxu0 %v772
    %947 = vmatprep.subr.bf16.mxu0 %v770
    %948 = vmatpush2.bf16.msra.mxu0 %v769
    %949 = vmatprep.subr.bf16.mxu0 %v767
    %950 = vmatpush2.bf16.msra.mxu0 %v766
    %951 = vmatprep.subr.bf16.mxu0 %v764
    %952 = vmatpush2.bf16.msra.mxu0 %v763
    %953 = vmatprep.subr.bf16.mxu0 %v761
    %954 = vmatpush2.bf16.msra.mxu0 %v760
    %955 = vmatprep.subr.bf16.mxu0 %v758
    %956 = vmatpush2.bf16.msra.mxu0 %v757
    %957 = vmatprep.mubr.bf16.mxu0 %v258
    %958 = vmatmul.mubr.bf16.gmra.mxu0 %v257
    %v959 = vpop.f32.mrf.mxu0
    %v960 = vadd.f32 %v410, %v959
    %v961 = vpop.f32.mrf.mxu0
    %v962 = vadd.f32 %v411, %v961
    %v963 = vpop.f32.mrf.mxu0
    %v964 = vpop.f32.mrf.mxu0
    %965 = vdwg.mxu0
    %966 = vmatprep.subr.bf16.mxu0 %v803
    %967 = vmatpush1.bf16.msra.mxu0 %v802
    %968 = vmatprep.subr.bf16.mxu0 %v800
    %969 = vmatpush1.bf16.msra.mxu0 %v799
    %970 = vmatprep.subr.bf16.mxu0 %v797
    %971 = vmatpush1.bf16.msra.mxu0 %v796
    %972 = vmatprep.subr.bf16.mxu0 %v794
    %973 = vmatpush1.bf16.msra.mxu0 %v793
    %974 = vmatprep.subr.bf16.mxu0 %v791
    %975 = vmatpush1.bf16.msra.mxu0 %v790
    %976 = vmatprep.subr.bf16.mxu0 %v788
    %977 = vmatpush1.bf16.msra.mxu0 %v787
    %978 = vmatprep.subr.bf16.mxu0 %v785
    %979 = vmatpush1.bf16.msra.mxu0 %v784
    %980 = vmatprep.subr.bf16.mxu0 %v782
    %981 = vmatpush1.bf16.msra.mxu0 %v781
    %982 = vmatprep.subr.bf16.mxu0 %v827
    %983 = vmatpush2.bf16.msra.mxu0 %v826
    %984 = vmatprep.subr.bf16.mxu0 %v824
    %985 = vmatpush2.bf16.msra.mxu0 %v823
    %986 = vmatprep.subr.bf16.mxu0 %v821
    %987 = vmatpush2.bf16.msra.mxu0 %v820
    %988 = vmatprep.subr.bf16.mxu0 %v818
    %989 = vmatpush2.bf16.msra.mxu0 %v817
    %990 = vmatprep.subr.bf16.mxu0 %v815
    %991 = vmatpush2.bf16.msra.mxu0 %v814
    %992 = vmatprep.subr.bf16.mxu0 %v812
    %993 = vmatpush2.bf16.msra.mxu0 %v811
    %994 = vmatprep.subr.bf16.mxu0 %v809
    %995 = vmatpush2.bf16.msra.mxu0 %v808
    %996 = vmatprep.subr.bf16.mxu0 %v806
    %997 = vmatpush2.bf16.msra.mxu0 %v805
    %998 = vmatprep.mubr.bf16.mxu0 %v260
    %999 = vmatmul.mubr.bf16.gmra.mxu0 %v259
    %v1000 = vpop.f32.mrf.mxu0
    %v1001 = vadd.f32 %v960, %v1000
    %v1002 = vpop.f32.mrf.mxu0
    %v1003 = vadd.f32 %v962, %v1002
    %v1004 = vpop.f32.mrf.mxu0
    %v1005 = vpop.f32.mrf.mxu0
    %1006 = vdwg.mxu0
    %1007 = vmatprep.subr.bf16.mxu0 0
    %1008 = vmatpush1.bf16.msra.mxu0 %v756
    %1009 = vmatprep.subr.bf16.mxu0 0
    %1010 = vmatpush1.bf16.msra.mxu0 %v753
    %1011 = vmatprep.subr.bf16.mxu0 0
    %1012 = vmatpush1.bf16.msra.mxu0 %v750
    %1013 = vmatprep.subr.bf16.mxu0 0
    %1014 = vmatpush1.bf16.msra.mxu0 %v747
    %1015 = vmatprep.subr.bf16.mxu0 0
    %1016 = vmatpush1.bf16.msra.mxu0 %v744
    %1017 = vmatprep.subr.bf16.mxu0 0
    %1018 = vmatpush1.bf16.msra.mxu0 %v741
    %1019 = vmatprep.subr.bf16.mxu0 0
    %1020 = vmatpush1.bf16.msra.mxu0 %v738
    %1021 = vmatprep.subr.bf16.mxu0 0
    %1022 = vmatpush1.bf16.msra.mxu0 %v735
    %1023 = vmatprep.subr.bf16.mxu0 0
    %1024 = vmatpush2.bf16.msra.mxu0 %v780
    %1025 = vmatprep.subr.bf16.mxu0 0
    %1026 = vmatpush2.bf16.msra.mxu0 %v777
    %1027 = vmatprep.subr.bf16.mxu0 0
    %1028 = vmatpush2.bf16.msra.mxu0 %v774
    %1029 = vmatprep.subr.bf16.mxu0 0
    %1030 = vmatpush2.bf16.msra.mxu0 %v771
    %1031 = vmatprep.subr.bf16.mxu0 0
    %1032 = vmatpush2.bf16.msra.mxu0 %v768
    %1033 = vmatprep.subr.bf16.mxu0 0
    %1034 = vmatpush2.bf16.msra.mxu0 %v765
    %1035 = vmatprep.subr.bf16.mxu0 0
    %1036 = vmatpush2.bf16.msra.mxu0 %v762
    %1037 = vmatprep.subr.bf16.mxu0 0
    %1038 = vmatpush2.bf16.msra.mxu0 %v759
    %1039 = vmatprep.mubr.bf16.mxu0 %v258
    %1040 = vmatmul.mubr.bf16.gmra.mxu0 %v257
    %v1041 = vpop.f32.mrf.mxu0
    %v1042 = vadd.f32 %v412, %v1041
    %v1043 = vpop.f32.mrf.mxu0
    %v1044 = vpop.f32.mrf.mxu0
    %v1045 = vpop.f32.mrf.mxu0
    %1046 = vdwg.mxu0
    %1047 = vmatprep.subr.bf16.mxu0 0
    %1048 = vmatpush1.bf16.msra.mxu0 %v804
    %1049 = vmatprep.subr.bf16.mxu0 0
    %1050 = vmatpush1.bf16.msra.mxu0 %v801
    %1051 = vmatprep.subr.bf16.mxu0 0
    %1052 = vmatpush1.bf16.msra.mxu0 %v798
    %1053 = vmatprep.subr.bf16.mxu0 0
    %1054 = vmatpush1.bf16.msra.mxu0 %v795
    %1055 = vmatprep.subr.bf16.mxu0 0
    %1056 = vmatpush1.bf16.msra.mxu0 %v792
    %1057 = vmatprep.subr.bf16.mxu0 0
    %1058 = vmatpush1.bf16.msra.mxu0 %v789
    %1059 = vmatprep.subr.bf16.mxu0 0
    %1060 = vmatpush1.bf16.msra.mxu0 %v786
    %1061 = vmatprep.subr.bf16.mxu0 0
    %1062 = vmatpush1.bf16.msra.mxu0 %v783
    %1063 = vmatprep.subr.bf16.mxu0 0
    %1064 = vmatpush2.bf16.msra.mxu0 %v828
    %1065 = vmatprep.subr.bf16.mxu0 0
    %1066 = vmatpush2.bf16.msra.mxu0 %v825
    %1067 = vmatprep.subr.bf16.mxu0 0
    %1068 = vmatpush2.bf16.msra.mxu0 %v822
    %1069 = vmatprep.subr.bf16.mxu0 0
    %1070 = vmatpush2.bf16.msra.mxu0 %v819
    %1071 = vmatprep.subr.bf16.mxu0 0
    %1072 = vmatpush2.bf16.msra.mxu0 %v816
    %1073 = vmatprep.subr.bf16.mxu0 0
    %1074 = vmatpush2.bf16.msra.mxu0 %v813
    %1075 = vmatprep.subr.bf16.mxu0 0
    %1076 = vmatpush2.bf16.msra.mxu0 %v810
    %1077 = vmatprep.subr.bf16.mxu0 0
    %1078 = vmatpush2.bf16.msra.mxu0 %v807
    %1079 = vmatprep.mubr.bf16.mxu0 %v260
    %1080 = vmatmul.mubr.bf16.gmra.mxu0 %v259
    %v1081 = vpop.f32.mrf.mxu0
    %v1082 = vadd.f32 %v1042, %v1081
    %v1083 = vpop.f32.mrf.mxu0
    %v1084 = vpop.f32.mrf.mxu0
    %v1085 = vpop.f32.mrf.mxu0
    %1086 = vdwg.mxu0
    %v1087 = vld [vmem:[%s5] sm:$0x7]
    %v1089 = vlaneseq
    %v1090 = vshrl.u32 %v1089, 7
    %v1091 = vsub.s32 0, %v1090
    %v1092 = vrot.slane %v1087, %v1091
    %v1093 = vlaneseq
    %v1094 = vshrl.u32 %v1093, 7
    %v1095 = vsub.s32 1, %v1094
    %v1096 = vrot.slane %v1087, %v1095
    %v1097 = vlaneseq
    %v1098 = vshrl.u32 %v1097, 7
    %v1099 = vsub.s32 2, %v1098
    %v1100 = vrot.slane %v1087, %v1099
    %v1104 = vadd.f32 %v1001, %v1092
    %v1105 = vadd.f32 %v1003, %v1096
    %v1106 = vadd.f32 %v1082, %v1100
    %v1107 = vmax.f32 %v1104, 0.0
    %v1108 = vmax.f32 %v1105, 0.0
    %v1109 = vmax.f32 %v1106, 0.0
    %v1110 = vld [vmem:[%s6] sm:$0x7]
    %v1112 = vlaneseq
    %v1113 = vshrl.u32 %v1112, 7
    %v1114 = vsub.s32 0, %v1113
    %v1115 = vrot.slane %v1110, %v1114
    %v1116 = vlaneseq
    %v1117 = vshrl.u32 %v1116, 7
    %v1118 = vsub.s32 1, %v1117
    %v1119 = vrot.slane %v1110, %v1118
    %v1120 = vlaneseq
    %v1121 = vshrl.u32 %v1120, 7
    %v1122 = vsub.s32 2, %v1121
    %v1123 = vrot.slane %v1110, %v1122
    %v1127 = vmul.f32 %v1107, %v1115
    %v1128 = vmul.f32 %v1108, %v1119
    %v1129 = vmul.f32 %v1109, %v1123
    %v1130 = vadd.f32 %v1127, %v1128
    %v1131 = vadd.f32 %v1130, %v1129
    %1132 = vadd.xlane.f32.xlu0 %v1131
    %v1133 = vpop.xlane.xlu0 %1132
    %v1134 = vld [vmem:[%s7] sm:$0x1]
    %v1136 = vlaneseq
    %v1137 = vshrl.u32 %v1136, 7
    %v1138 = vsub.s32 0, %v1137
    %v1139 = vrot.slane %v1134, %v1138
    %v1141 = vadd.f32 %v1133, %v1139
    %1142 = vst [vmem:[#allocation10] sm:$0xff] %v1141
    // Predicated region
    $region50: #{tpu_custom_call.1} parent=1 // pred_check
      _
    $region51: #{tpu_custom_call.1} parent=1 // pred_check_branch
      %1144 = sbr.rel (0) target = $region53
    $region52: #{tpu_custom_call.1} parent=1 // pred_region
      %s1146 = ssub.s32 128, 128
      %1147 = vsyncadd [#allocation4], %s1146
      %s1149 = sshll.u32 [#allocation10], 4
      %s1150 = int_to_ptr.vmem [resolvable:$true] %s1149
      %1152 = dma.vmem_to_hbm [thread:$0]  %s1150, 128, %s8, [#allocation4]
    $region53: #{tpu_custom_call.1} parent=1 // pred_fallthru
      _
    // Predicated region
    $region54: #{tpu_custom_call.1} parent=1 // pred_check
      _
    $region55: #{tpu_custom_call.1} parent=1 // pred_check_branch
      %1154 = sbr.rel (0) target = $region57
    $region56: #{tpu_custom_call.1} parent=1 // pred_region
      %1155 = dma.done [#allocation4], 128
    $region57: #{tpu_custom_call.1} parent=1 // pred_fallthru
      _
    %1156 = vsyncpa [#allocation3], 1
    %1157 = vsyncpa [#allocation6], 1
    %1158 = vsyncpa [#allocation9], 1
    %1159 = vsyncpa [#allocation4], 1

</llo_original>
